<compile_context>
chip_gen: v5e
topology: v5e:2x2
jax: 0.10.0
libtpu: 0.0.40
codegen_flags: <defaults>
</compile_context>

<pallas_src>
import functools

import jax
import jax.numpy as jnp
from jax.experimental import pallas as pl
from jax.experimental.pallas import tpu as pltpu

_LANE = 128                      # lane width: output/feature dims padded to this
_SUBLANE = 8                     # sublane granularity for batch-row tiles
_VMEM_LIMIT_BYTES = 48 * 1024 * 1024   # raised scoped-VMEM limit (safe on v5e/v6e/v7x)
_VMEM_TILE_BUDGET = 32 * 1024 * 1024   # cap for resident tiles; leaves pipelining headroom


def _round_up(x, m):
    return (x + m - 1) // m * m


def _fused_mlp_kernel(x_ref, *refs, num_layers, neg_slope, compute_dtype):
    """Push one batch tile through the whole MLP.

    refs = (w0, b0, w1, b1, ..., w_{L-1}, b_{L-1}, o_ref).  Weights/biases are
    VMEM-resident (constant index_map, single-buffered); intermediate
    activations live in vregs -- no HBM traffic between layers.
    """
    o_ref = refs[-1]
    # Cast activations to the MXU input dtype *inside* the kernel (a wrapper
    # side cast would cost an extra HBM pass over x).
    h = x_ref[...].astype(compute_dtype)
    for layer in range(num_layers):
        w = refs[2 * layer][...]
        b = refs[2 * layer + 1][...]                  # (1, N) f32, broadcasts over rows
        h = jnp.dot(h, w, preferred_element_type=jnp.float32) + b
        if layer < num_layers - 1:
            h = jnp.maximum(h, neg_slope * h)         # LeakyReLU(0.2), single VPU max
            h = h.astype(compute_dtype)               # bf16 MXU input for next layer
    o_ref[...] = h.astype(o_ref.dtype)


def prepare_mlp_params(params, compute_dtype=jnp.bfloat16):
    """Pad + cast torch-style Linear params ONCE (hoisted out of the forward).

    params: list of (w, b) with w: [in_features, out_features] (transpose of
    torch's [out, in]) and b: [out_features].
    Layer 0 keeps its K dim unpadded (full-dim block is legal even if <128);
    every output dim (and subsequent K dims) is zero-padded to the 128-lane
    width so all matmuls and the final store are lane-dense.  Zero padding is
    exact (zero weights/bias, LeakyReLU(0) == 0).
    """
    weights, biases = [], []
    for i, (w, b) in enumerate(params):
        k, n = w.shape
        kp = k if i == 0 else _round_up(k, _LANE)
        npad = _round_up(n, _LANE)
        wp = jnp.zeros((kp, npad), compute_dtype).at[:k, :n].set(w.astype(compute_dtype))
        bp = jnp.zeros((1, npad), jnp.float32).at[0, :n].set(b.astype(jnp.float32))
        weights.append(wp)
        biases.append(bp)
    return weights, biases


def mlp_forward(x, weights, biases, *, out_features, block_m=512, neg_slope=0.2):
    """Equivalent of MLP(*sizes).forward(x) with batchnorm=False, dropout=False.

    x:               [batch, in_features] activations (f32 or bf16).
    weights, biases: pre-padded params from prepare_mlp_params.
    out_features:    un-padded output width (static).
    """
    M, K = x.shape
    num_layers = len(weights)
    assert weights[0].shape[0] == K, "layer-0 weight K must match x"
    out_dtype = x.dtype
    compute_dtype = weights[0].dtype
    n_last_pad = weights[-1].shape[1]

    # --- batch tiling -------------------------------------------------------
    mp_rows = _round_up(M, _SUBLANE)
    tm = min(_round_up(block_m, _SUBLANE), mp_rows)
    # v7x has 2 TensorCores: make sure the ("parallel") batch grid has >= 2
    # steps when the batch allows (an extra step is harmless on v5e/v6e).
    if tm == mp_rows and mp_rows >= 2 * _SUBLANE:
        tm = _round_up(-(-mp_rows // 2), _SUBLANE)

    # Shrink tm until resident VMEM (x/out double-buffered, weights single-
    # buffered, f32 intermediates) fits the tile budget.
    wb_bytes = (sum(int(w.size) * w.dtype.itemsize for w in weights)
                + sum(int(b.size) * b.dtype.itemsize for b in biases))
    max_npad = max(w.shape[1] for w in weights)

    def tile_bytes(t):
        return (2 * t * K * x.dtype.itemsize
                + 2 * t * n_last_pad * jnp.dtype(out_dtype).itemsize
                + 2 * t * max_npad * 4
                + wb_bytes)

    while tm > _SUBLANE and tile_bytes(tm) > _VMEM_TILE_BUDGET:
        tm = max(_SUBLANE, _round_up(tm // 2, _SUBLANE))

    mp = _round_up(M, tm)
    x_in = x if mp == M else jnp.pad(x, ((0, mp - M), (0, 0)))

    # --- specs ---------------------------------------------------------------
    # x block: last dim == full array dim (legal even if not a multiple of 128),
    # so no column padding / extra copy of x is needed.
    in_specs = [pl.BlockSpec((tm, K), lambda i: (i, 0))]
    flat_inputs = [x_in]
    flops = 0
    bytes_accessed = int(x_in.size) * x_in.dtype.itemsize + wb_bytes
    for w, b in zip(weights, biases):
        flat_inputs += [w, b]
        in_specs += [
            # Constant index_map + single buffer: weights/bias stay resident in
            # VMEM across all batch tiles without a duplicate pipeline buffer.
            pl.BlockSpec(w.shape, lambda i: (0, 0), pipeline_mode=pl.Buffered(1)),
            pl.BlockSpec(b.shape, lambda i: (0, 0), pipeline_mode=pl.Buffered(1)),
        ]
        flops += 2 * mp * w.shape[0] * w.shape[1]
    bytes_accessed += mp * n_last_pad * jnp.dtype(out_dtype).itemsize

    kernel = functools.partial(
        _fused_mlp_kernel, num_layers=num_layers, neg_slope=neg_slope,
        compute_dtype=compute_dtype)

    out_p = pl.pallas_call(
        kernel,
        out_shape=jax.ShapeDtypeStruct((mp, n_last_pad), out_dtype),
        grid=(mp // tm,),
        in_specs=in_specs,
        out_specs=pl.BlockSpec((tm, n_last_pad), lambda i: (i, 0)),
        compiler_params=pltpu.CompilerParams(
            dimension_semantics=("parallel",),       # shard batch tiles across TCs
            vmem_limit_bytes=_VMEM_LIMIT_BYTES,
        ),
        cost_estimate=pl.CostEstimate(
            flops=flops, transcendentals=0, bytes_accessed=bytes_accessed),
    )(*flat_inputs)

    # Slice away batch + lane padding (cheap XLA slice in the wrapper).
    return out_p[:M, :out_features]


def init_mlp_params(key, sizes):
    """Deterministic init mimicking torch.nn.Linear (U[-1/sqrt(in), 1/sqrt(in)])."""
    params = []
    for i in range(1, len(sizes)):
        fan_in, fan_out = sizes[i - 1], sizes[i]
        key, kw, kb = jax.random.split(key, 3)
        bound = 1.0 / (fan_in ** 0.5)
        w = jax.random.uniform(kw, (fan_in, fan_out), jnp.float32, -bound, bound)
        b = jax.random.uniform(kb, (fan_out,), jnp.float32, -bound, bound)
        params.append((w, b))
    return params


if __name__ == "__main__":
    # MLP(32, 64, 64, 16): three Linear layers, LeakyReLU(0.2) after the first two.
    sizes = (32, 64, 64, 16)
    batch = 8

    key = jax.random.PRNGKey(0)
    key, kx = jax.random.split(key)
    x = jax.random.normal(kx, (batch, sizes[0]), dtype=jnp.float32)

    params = init_mlp_params(jax.random.PRNGKey(0), sizes)
    # Pad + cast weights ONCE (bf16 MXU inputs, f32 accumulation in-kernel).
    weights, biases = prepare_mlp_params(params, compute_dtype=jnp.bfloat16)

    fwd = jax.jit(functools.partial(mlp_forward, out_features=sizes[-1]))
    out = fwd(x, weights, biases)
    out = jax.block_until_ready(out)

    # Reference check in plain f32 JAX.  bf16 MXU inputs => loose tolerance
    # (expected numerics change, not a bug).
    ref = x
    for idx, (w, b) in enumerate(params):
        ref = ref @ w + b
        if idx < len(params) - 1:
            ref = jnp.where(ref > 0, ref, 0.2 * ref)

    assert out.shape == (batch, sizes[-1])
    max_err = float(jnp.max(jnp.abs(out - ref)))
    assert jnp.allclose(out, ref, atol=3e-2, rtol=3e-2), f"max abs err {max_err}"

    print("KERNEL_OK")
</pallas_src>

<mosaic_0001>
module attributes {stable_mosaic.version = 11 : i64} {
  func.func @_fused_mlp_kernel(%arg0: i32, %arg1: memref<8x32xf32, #tpu.memory_space<vmem>>, %arg2: memref<32x128xbf16, #tpu.memory_space<vmem>>, %arg3: memref<1x128xf32, #tpu.memory_space<vmem>>, %arg4: memref<128x128xbf16, #tpu.memory_space<vmem>>, %arg5: memref<1x128xf32, #tpu.memory_space<vmem>>, %arg6: memref<128x128xbf16, #tpu.memory_space<vmem>>, %arg7: memref<1x128xf32, #tpu.memory_space<vmem>>, %arg8: memref<8x128xf32, #tpu.memory_space<vmem>>) attributes {dimension_semantics = [#tpu.dimension_semantics<parallel>], iteration_bounds = array<i64: 1>, scalar_prefetch = 0 : i64, scratch_operands = 0 : i64, tpu.core_type = #tpu.core_type<tc>, window_params = [{transform_indices = @transform_0, window_bounds = array<i64: 8, 32>}, {pipeline_mode = #tpu.pipeline_mode<synchronous>, transform_indices = @transform_1, window_bounds = array<i64: 32, 128>}, {pipeline_mode = #tpu.pipeline_mode<synchronous>, transform_indices = @transform_2, window_bounds = array<i64: 1, 128>}, {pipeline_mode = #tpu.pipeline_mode<synchronous>, transform_indices = @transform_3, window_bounds = array<i64: 128, 128>}, {pipeline_mode = #tpu.pipeline_mode<synchronous>, transform_indices = @transform_4, window_bounds = array<i64: 1, 128>}, {pipeline_mode = #tpu.pipeline_mode<synchronous>, transform_indices = @transform_5, window_bounds = array<i64: 128, 128>}, {pipeline_mode = #tpu.pipeline_mode<synchronous>, transform_indices = @transform_6, window_bounds = array<i64: 1, 128>}, {transform_indices = @transform_7, window_bounds = array<i64: 8, 128>}]} {
    %c0 = arith.constant 0 : index
    %c0_0 = arith.constant 0 : index
    %0 = vector.load %arg1[%c0, %c0_0] : memref<8x32xf32, #tpu.memory_space<vmem>>, vector<8x32xf32>
    %1 = arith.truncf %0 : vector<8x32xf32> to vector<8x32xbf16>
    %c0_1 = arith.constant 0 : index
    %c0_2 = arith.constant 0 : index
    %2 = vector.load %arg2[%c0_1, %c0_2] : memref<32x128xbf16, #tpu.memory_space<vmem>>, vector<32x128xbf16>
    %c0_3 = arith.constant 0 : index
    %c0_4 = arith.constant 0 : index
    %3 = vector.load %arg3[%c0_3, %c0_4] : memref<1x128xf32, #tpu.memory_space<vmem>>, vector<1x128xf32>
    %cst = arith.constant dense<0.000000e+00> : vector<8x128xf32>
    %4 = tpu.matmul %1, %2, %cst {dimension_numbers = #tpu.dot_dimension_numbers<[1], [0], [0], [1], [0, 0, 1, 1], [], []>} : vector<8x32xbf16>, vector<32x128xbf16>, vector<8x128xf32> -> vector<8x128xf32>
    %5 = vector.broadcast %3 : vector<1x128xf32> to vector<8x128xf32>
    %6 = arith.addf %4, %5 : vector<8x128xf32>
    %cst_5 = arith.constant 2.000000e-01 : f32
    %7 = vector.broadcast %cst_5 : f32 to vector<8x128xf32>
    %8 = arith.mulf %7, %6 : vector<8x128xf32>
    %9 = arith.maximumf %6, %8 : vector<8x128xf32>
    %10 = arith.truncf %9 : vector<8x128xf32> to vector<8x128xbf16>
    %c0_6 = arith.constant 0 : index
    %c0_7 = arith.constant 0 : index
    %11 = vector.load %arg4[%c0_6, %c0_7] : memref<128x128xbf16, #tpu.memory_space<vmem>>, vector<128x128xbf16>
    %c0_8 = arith.constant 0 : index
    %c0_9 = arith.constant 0 : index
    %12 = vector.load %arg5[%c0_8, %c0_9] : memref<1x128xf32, #tpu.memory_space<vmem>>, vector<1x128xf32>
    %cst_10 = arith.constant dense<0.000000e+00> : vector<8x128xf32>
    %13 = tpu.matmul %10, %11, %cst_10 {dimension_numbers = #tpu.dot_dimension_numbers<[1], [0], [0], [1], [0, 0, 1, 1], [], []>} : vector<8x128xbf16>, vector<128x128xbf16>, vector<8x128xf32> -> vector<8x128xf32>
    %14 = vector.broadcast %12 : vector<1x128xf32> to vector<8x128xf32>
    %15 = arith.addf %13, %14 : vector<8x128xf32>
    %cst_11 = arith.constant 2.000000e-01 : f32
    %16 = vector.broadcast %cst_11 : f32 to vector<8x128xf32>
    %17 = arith.mulf %16, %15 : vector<8x128xf32>
    %18 = arith.maximumf %15, %17 : vector<8x128xf32>
    %19 = arith.truncf %18 : vector<8x128xf32> to vector<8x128xbf16>
    %c0_12 = arith.constant 0 : index
    %c0_13 = arith.constant 0 : index
    %20 = vector.load %arg6[%c0_12, %c0_13] : memref<128x128xbf16, #tpu.memory_space<vmem>>, vector<128x128xbf16>
    %c0_14 = arith.constant 0 : index
    %c0_15 = arith.constant 0 : index
    %21 = vector.load %arg7[%c0_14, %c0_15] : memref<1x128xf32, #tpu.memory_space<vmem>>, vector<1x128xf32>
    %cst_16 = arith.constant dense<0.000000e+00> : vector<8x128xf32>
    %22 = tpu.matmul %19, %20, %cst_16 {dimension_numbers = #tpu.dot_dimension_numbers<[1], [0], [0], [1], [0, 0, 1, 1], [], []>} : vector<8x128xbf16>, vector<128x128xbf16>, vector<8x128xf32> -> vector<8x128xf32>
    %23 = vector.broadcast %21 : vector<1x128xf32> to vector<8x128xf32>
    %24 = arith.addf %22, %23 : vector<8x128xf32>
    %c0_17 = arith.constant 0 : index
    %c0_18 = arith.constant 0 : index
    %25 = vector.load %arg8[%c0_17, %c0_18] : memref<8x128xf32, #tpu.memory_space<vmem>>, vector<8x128xf32>
    tpu.vector_store %arg8[%c0_17, %c0_18], %24 {strides = array<i32>} : memref<8x128xf32, #tpu.memory_space<vmem>>, vector<8x128xf32>,
    return
  }
  func.func @transform_0(%arg0: i32) -> (i32, i32) {
    %c0_i32 = arith.constant 0 : i32
    %c0_i32_0 = arith.constant 0 : i32
    return %arg0, %c0_i32 : i32, i32
  }
  func.func @transform_1(%arg0: i32) -> (i32, i32) {
    %c0_i32 = arith.constant 0 : i32
    %c0_i32_0 = arith.constant 0 : i32
    %c0_i32_1 = arith.constant 0 : i32
    return %c0_i32, %c0_i32_0 : i32, i32
  }
  func.func @transform_2(%arg0: i32) -> (i32, i32) {
    %c0_i32 = arith.constant 0 : i32
    %c0_i32_0 = arith.constant 0 : i32
    %c0_i32_1 = arith.constant 0 : i32
    return %c0_i32, %c0_i32_0 : i32, i32
  }
  func.func @transform_3(%arg0: i32) -> (i32, i32) {
    %c0_i32 = arith.constant 0 : i32
    %c0_i32_0 = arith.constant 0 : i32
    %c0_i32_1 = arith.constant 0 : i32
    return %c0_i32, %c0_i32_0 : i32, i32
  }
  func.func @transform_4(%arg0: i32) -> (i32, i32) {
    %c0_i32 = arith.constant 0 : i32
    %c0_i32_0 = arith.constant 0 : i32
    %c0_i32_1 = arith.constant 0 : i32
    return %c0_i32, %c0_i32_0 : i32, i32
  }
  func.func @transform_5(%arg0: i32) -> (i32, i32) {
    %c0_i32 = arith.constant 0 : i32
    %c0_i32_0 = arith.constant 0 : i32
    %c0_i32_1 = arith.constant 0 : i32
    return %c0_i32, %c0_i32_0 : i32, i32
  }
  func.func @transform_6(%arg0: i32) -> (i32, i32) {
    %c0_i32 = arith.constant 0 : i32
    %c0_i32_0 = arith.constant 0 : i32
    %c0_i32_1 = arith.constant 0 : i32
    return %c0_i32, %c0_i32_0 : i32, i32
  }
  func.func @transform_7(%arg0: i32) -> (i32, i32) {
    %c0_i32 = arith.constant 0 : i32
    %c0_i32_0 = arith.constant 0 : i32
    return %arg0, %c0_i32 : i32, i32
  }
}

</mosaic_0001>

<llo_original>
// kernel: mlp_forward.1
$region0: #{mlp_forward.1}
  #allocation0 [shape = 'u32[]', space=smem, size = 0x4, offset = 0x4, fixed_abs, tag = 'smem constant byte address 0x4 - core index']
  #allocation1 [shape = 'u32[72,128]{1,0:T(1,128)}', space=vmem, size = 0x9000, scoped, tag = 'internal scratch']
  %s0 = inlined_call_operand.hbm [shape: f32[8,32], index: 0, kind: input, shape index: {}]
  %s1 = inlined_call_operand.hbm [shape: bf16[32,128], index: 1, kind: input, shape index: {}]
  %s2 = inlined_call_operand.vmem [shape: f32[1,128], index: 2, kind: input, shape index: {}]
  %s3 = inlined_call_operand.hbm [shape: bf16[128,128], index: 3, kind: input, shape index: {}]
  %s4 = inlined_call_operand.vmem [shape: f32[1,128], index: 4, kind: input, shape index: {}]
  %s5 = inlined_call_operand.hbm [shape: bf16[128,128], index: 5, kind: input, shape index: {}]
  %s6 = inlined_call_operand.vmem [shape: f32[1,128], index: 6, kind: input, shape index: {}]
  %s7 = inlined_call_operand.hbm [shape: f32[8,128], index: 7, kind: output, shape index: {}]
  %s8 = sld [smem:[#allocation0]]
  $region54: #{mlp_forward.1} parent=0
    _
  %s10 = ssub.s32 1, %s8
  %s11 = scalar_select 0, %s10, %s8
  $region1: #{mlp_forward.1} parent=0
    #allocation2 [shape = 'u8[4096]{0}', space=vmem, size = 0x1000, scoped, tag = 'input window, operand 0, single buffered']
    #allocation3 [shape = 's32[1]{0}', space=sflag, size = 0x4, scoped, tag = 'scoped memory for mlp_forward.1']
    #allocation4 [shape = 's32[1]{0}', space=sflag, size = 0x4, scoped, tag = 'scoped memory for mlp_forward.1']
    #allocation5 [shape = 'u8[8192]{0}', space=vmem, size = 0x2000, scoped, tag = 'input window, operand 1, single buffered']
    #allocation6 [shape = 's32[1]{0}', space=sflag, size = 0x4, scoped, tag = 'scoped memory for mlp_forward.1']
    #allocation7 [shape = 'u8[32768]{0}', space=vmem, size = 0x8000, scoped, tag = 'input window, operand 3, single buffered']
    #allocation8 [shape = 'u8[32768]{0}', space=vmem, size = 0x8000, scoped, tag = 'input window, operand 5, single buffered']
    #allocation9 [shape = 's32[1]{0}', space=sflag, size = 0x4, scoped, tag = 'scoped memory for mlp_forward.1']
    #allocation10 [shape = 'u8[4096]{0}', space=vmem, size = 0x1000, scoped, tag = 'output window, operand 0, single buffered']
    %12 = vsyncpa [#allocation3], 0
    %13 = vsyncpa [#allocation6], 0
    %14 = vsyncpa [#allocation9], 0
    %15 = vsyncpa [#allocation4], 0
    // Predicated region
    $region2: #{mlp_forward.1} parent=1 // pred_check
      _
    $region3: #{mlp_forward.1} parent=1 // pred_check_branch
      %17 = sbr.rel (0) target = $region5
    $region4: #{mlp_forward.1} parent=1 // pred_region
      %19 = vsyncadd [#allocation3], 0
      %s21 = sshll.u32 %s0, 4
      %s22 = int_to_ptr.hbm [resolvable:$true] %s21
      %s23 = sshll.u32 [#allocation2], 4
      %s24 = int_to_ptr.vmem [resolvable:$true] %s23
      %26 = dma.hbm_to_vmem [thread:$0]  %s22, 128, %s24, [#allocation3]
    $region5: #{mlp_forward.1} parent=1 // pred_fallthru
      _
    // Predicated region
    $region6: #{mlp_forward.1} parent=1 // pred_check
      _
    $region7: #{mlp_forward.1} parent=1 // pred_check_branch
      %28 = sbr.rel (0) target = $region9
    $region8: #{mlp_forward.1} parent=1 // pred_region
      %30 = vsyncadd [#allocation6], 0
      %s31 = sshll.u32 %s1, 4
      %s32 = int_to_ptr.hbm [resolvable:$true] %s31
      %s33 = sshll.u32 [#allocation5], 4
      %s34 = int_to_ptr.vmem [resolvable:$true] %s33
      %39 = dma.hbm_to_vmem [thread:$0]  %s32, 256, %s34, [#allocation6], 64, 64, 4
    $region9: #{mlp_forward.1} parent=1 // pred_fallthru
      _
    // Predicated region
    $region10: #{mlp_forward.1} parent=1 // pred_check
      _
    $region11: #{mlp_forward.1} parent=1 // pred_check_branch
      %41 = sbr.rel (0) target = $region13
    $region12: #{mlp_forward.1} parent=1 // pred_region
      _
    $region13: #{mlp_forward.1} parent=1 // pred_fallthru
      _
    // Predicated region
    $region14: #{mlp_forward.1} parent=1 // pred_check
      _
    $region15: #{mlp_forward.1} parent=1 // pred_check_branch
      %43 = sbr.rel (0) target = $region17
    $region16: #{mlp_forward.1} parent=1 // pred_region
      %45 = vsyncadd [#allocation6], 0
      %s46 = sshll.u32 %s3, 4
      %s47 = int_to_ptr.hbm [resolvable:$true] %s46
      %s48 = sshll.u32 [#allocation7], 4
      %s49 = int_to_ptr.vmem [resolvable:$true] %s48
      %54 = dma.hbm_to_vmem [thread:$0]  %s47, 1024, %s49, [#allocation6], 64, 64, 4
    $region17: #{mlp_forward.1} parent=1 // pred_fallthru
      _
    // Predicated region
    $region18: #{mlp_forward.1} parent=1 // pred_check
      _
    $region19: #{mlp_forward.1} parent=1 // pred_check_branch
      %56 = sbr.rel (0) target = $region21
    $region20: #{mlp_forward.1} parent=1 // pred_region
      _
    $region21: #{mlp_forward.1} parent=1 // pred_fallthru
      _
    // Predicated region
    $region22: #{mlp_forward.1} parent=1 // pred_check
      _
    $region23: #{mlp_forward.1} parent=1 // pred_check_branch
      %58 = sbr.rel (0) target = $region25
    $region24: #{mlp_forward.1} parent=1 // pred_region
      %60 = vsyncadd [#allocation9], 0
      %s61 = sshll.u32 %s5, 4
      %s62 = int_to_ptr.hbm [resolvable:$true] %s61
      %s63 = sshll.u32 [#allocation8], 4
      %s64 = int_to_ptr.vmem [resolvable:$true] %s63
      %69 = dma.hbm_to_vmem [thread:$0]  %s62, 1024, %s64, [#allocation9], 64, 64, 4
    $region25: #{mlp_forward.1} parent=1 // pred_fallthru
      _
    // Predicated region
    $region26: #{mlp_forward.1} parent=1 // pred_check
      _
    $region27: #{mlp_forward.1} parent=1 // pred_check_branch
      %71 = sbr.rel (0) target = $region29
    $region28: #{mlp_forward.1} parent=1 // pred_region
      _
    $region29: #{mlp_forward.1} parent=1 // pred_fallthru
      _
    // Predicated region
    $region30: #{mlp_forward.1} parent=1 // pred_check
      _
    $region31: #{mlp_forward.1} parent=1 // pred_check_branch
      %73 = sbr.rel (0) target = $region33
    $region32: #{mlp_forward.1} parent=1 // pred_region
      %75 = dma.done [#allocation3], 128
    $region33: #{mlp_forward.1} parent=1 // pred_fallthru
      _
    // Predicated region
    $region34: #{mlp_forward.1} parent=1 // pred_check
      _
    $region35: #{mlp_forward.1} parent=1 // pred_check_branch
      %77 = sbr.rel (0) target = $region37
    $region36: #{mlp_forward.1} parent=1 // pred_region
      %79 = dma.done [#allocation6], 256
    $region37: #{mlp_forward.1} parent=1 // pred_fallthru
      _
    // Predicated region
    $region38: #{mlp_forward.1} parent=1 // pred_check
      _
    $region39: #{mlp_forward.1} parent=1 // pred_check_branch
      %81 = sbr.rel (0) target = $region41
    $region40: #{mlp_forward.1} parent=1 // pred_region
      %83 = dma.done [#allocation6], 1024
    $region41: #{mlp_forward.1} parent=1 // pred_fallthru
      _
    // Predicated region
    $region42: #{mlp_forward.1} parent=1 // pred_check
      _
    $region43: #{mlp_forward.1} parent=1 // pred_check_branch
      %85 = sbr.rel (0) target = $region45
    $region44: #{mlp_forward.1} parent=1 // pred_region
      %87 = dma.done [#allocation9], 1024
    $region45: #{mlp_forward.1} parent=1 // pred_fallthru
      _
    %v89 = vld [vmem:[#allocation2] sm:$0xff]
    %v90 = vpack.c.bf16 %v89, %v89
    %v91 = vld [vmem:[#allocation5] sm:$0xf]
    %v92 = vld [vmem:[#allocation5 + $0x4] sm:$0xf]
    %v93 = vld [vmem:[#allocation5 + $0x8] sm:$0xf]
    %v94 = vld [vmem:[#allocation5 + $0xc] sm:$0xf]
    %v95 = vld [vmem:[%s2] sm:$0x1]
    %v97 = vperm.slane %v95, 0
    %v103 = vunpack.c.l.b16 %v91
    %v104 = vunpack.c.l.b16 %v92
    %v105 = vunpack.c.l.b16 %v93
    %v106 = vunpack.c.l.b16 %v94
    %v107 = vpack.c.b16 %v104, %v103
    %v108 = vpack.c.b16 %v106, %v105
    %vm111 = vcmask 261120
    %v113 = vsel %vm111, %v90, 0
    %115 = vmatpush.bf16.msra.mxu0 0
    %116 = vmatpush.bf16.msra.mxu0 0
    %117 = vmatpush.bf16.msra.mxu0 0
    %118 = vmatpush.bf16.msra.mxu0 0
    %119 = vmatpush.bf16.msra.mxu0 0
    %120 = vmatpush.bf16.msra.mxu0 0
    %121 = vmatpush.bf16.msra.mxu0 %v108
    %122 = vmatpush.bf16.msra.mxu0 %v107
    %123 = vmatmul.bf16.gmra.mxu0 %v113
    %v124 = vpop.f32.mrf.mxu0
    %v125 = vadd.f32 %v97, %v124
    %v126 = vpop.f32.mrf.mxu0
    %127 = vdwg.mxu0
    %v128 = vmul.f32 %v125, 0.2
    %v129 = vmax.f32 %v125, %v128
    %v130 = vpack.c.bf16 %v129, %v129
    %v131 = vld [vmem:[#allocation7] sm:$0xf]
    %v132 = vld [vmem:[#allocation7 + $0x4] sm:$0xf]
    %v133 = vld [vmem:[#allocation7 + $0x8] sm:$0xf]
    %v134 = vld [vmem:[#allocation7 + $0xc] sm:$0xf]
    %v135 = vld [vmem:[#allocation7 + $0x10] sm:$0xf]
    %v136 = vld [vmem:[#allocation7 + $0x14] sm:$0xf]
    %v137 = vld [vmem:[#allocation7 + $0x18] sm:$0xf]
    %v138 = vld [vmem:[#allocation7 + $0x1c] sm:$0xf]
    %v139 = vld [vmem:[#allocation7 + $0x20] sm:$0xf]
    %v140 = vld [vmem:[#allocation7 + $0x24] sm:$0xf]
    %v141 = vld [vmem:[#allocation7 + $0x28] sm:$0xf]
    %v142 = vld [vmem:[#allocation7 + $0x2c] sm:$0xf]
    %v143 = vld [vmem:[#allocation7 + $0x30] sm:$0xf]
    %v144 = vld [vmem:[#allocation7 + $0x34] sm:$0xf]
    %v145 = vld [vmem:[#allocation7 + $0x38] sm:$0xf]
    %v146 = vld [vmem:[#allocation7 + $0x3c] sm:$0xf]
    %v147 = vld [vmem:[%s4] sm:$0x1]
    %v149 = vperm.slane %v147, 0
    %v167 = vunpack.c.l.b16 %v131
    %v168 = vunpack.c.l.b16 %v132
    %v169 = vunpack.c.l.b16 %v133
    %v170 = vunpack.c.l.b16 %v134
    %v171 = vunpack.c.l.b16 %v135
    %v172 = vunpack.c.l.b16 %v136
    %v173 = vunpack.c.l.b16 %v137
    %v174 = vunpack.c.l.b16 %v138
    %v175 = vunpack.c.l.b16 %v139
    %v176 = vunpack.c.l.b16 %v140
    %v177 = vunpack.c.l.b16 %v141
    %v178 = vunpack.c.l.b16 %v142
    %v179 = vunpack.c.l.b16 %v143
    %v180 = vunpack.c.l.b16 %v144
    %v181 = vunpack.c.l.b16 %v145
    %v182 = vunpack.c.l.b16 %v146
    %v183 = vpack.c.b16 %v168, %v167
    %v184 = vpack.c.b16 %v170, %v169
    %v185 = vpack.c.b16 %v172, %v171
    %v186 = vpack.c.b16 %v174, %v173
    %v187 = vpack.c.b16 %v176, %v175
    %v188 = vpack.c.b16 %v178, %v177
    %v189 = vpack.c.b16 %v180, %v179
    %v190 = vpack.c.b16 %v182, %v181
    %199 = vmatpush.bf16.msra.mxu0 %v190
    %200 = vmatpush.bf16.msra.mxu0 %v189
    %201 = vmatpush.bf16.msra.mxu0 %v188
    %202 = vmatpush.bf16.msra.mxu0 %v187
    %203 = vmatpush.bf16.msra.mxu0 %v186
    %204 = vmatpush.bf16.msra.mxu0 %v185
    %205 = vmatpush.bf16.msra.mxu0 %v184
    %206 = vmatpush.bf16.msra.mxu0 %v183
    %207 = vmatmul.bf16.gmra.mxu0 %v130
    %v208 = vpop.f32.mrf.mxu0
    %v209 = vadd.f32 %v149, %v208
    %v210 = vpop.f32.mrf.mxu0
    %211 = vdwg.mxu0
    %v212 = vmul.f32 %v209, 0.2
    %v213 = vmax.f32 %v209, %v212
    %v214 = vpack.c.bf16 %v213, %v213
    %v215 = vld [vmem:[#allocation8] sm:$0xf]
    %v216 = vld [vmem:[#allocation8 + $0x4] sm:$0xf]
    %v217 = vld [vmem:[#allocation8 + $0x8] sm:$0xf]
    %v218 = vld [vmem:[#allocation8 + $0xc] sm:$0xf]
    %v219 = vld [vmem:[#allocation8 + $0x10] sm:$0xf]
    %v220 = vld [vmem:[#allocation8 + $0x14] sm:$0xf]
    %v221 = vld [vmem:[#allocation8 + $0x18] sm:$0xf]
    %v222 = vld [vmem:[#allocation8 + $0x1c] sm:$0xf]
    %v223 = vld [vmem:[#allocation8 + $0x20] sm:$0xf]
    %v224 = vld [vmem:[#allocation8 + $0x24] sm:$0xf]
    %v225 = vld [vmem:[#allocation8 + $0x28] sm:$0xf]
    %v226 = vld [vmem:[#allocation8 + $0x2c] sm:$0xf]
    %v227 = vld [vmem:[#allocation8 + $0x30] sm:$0xf]
    %v228 = vld [vmem:[#allocation8 + $0x34] sm:$0xf]
    %v229 = vld [vmem:[#allocation8 + $0x38] sm:$0xf]
    %v230 = vld [vmem:[#allocation8 + $0x3c] sm:$0xf]
    %v231 = vld [vmem:[%s6] sm:$0x1]
    %v233 = vperm.slane %v231, 0
    %v251 = vunpack.c.l.b16 %v215
    %v252 = vunpack.c.l.b16 %v216
    %v253 = vunpack.c.l.b16 %v217
    %v254 = vunpack.c.l.b16 %v218
    %v255 = vunpack.c.l.b16 %v219
    %v256 = vunpack.c.l.b16 %v220
    %v257 = vunpack.c.l.b16 %v221
    %v258 = vunpack.c.l.b16 %v222
    %v259 = vunpack.c.l.b16 %v223
    %v260 = vunpack.c.l.b16 %v224
    %v261 = vunpack.c.l.b16 %v225
    %v262 = vunpack.c.l.b16 %v226
    %v263 = vunpack.c.l.b16 %v227
    %v264 = vunpack.c.l.b16 %v228
    %v265 = vunpack.c.l.b16 %v229
    %v266 = vunpack.c.l.b16 %v230
    %v267 = vpack.c.b16 %v252, %v251
    %v268 = vpack.c.b16 %v254, %v253
    %v269 = vpack.c.b16 %v256, %v255
    %v270 = vpack.c.b16 %v258, %v257
    %v271 = vpack.c.b16 %v260, %v259
    %v272 = vpack.c.b16 %v262, %v261
    %v273 = vpack.c.b16 %v264, %v263
    %v274 = vpack.c.b16 %v266, %v265
    %283 = vmatpush.bf16.msra.mxu0 %v274
    %284 = vmatpush.bf16.msra.mxu0 %v273
    %285 = vmatpush.bf16.msra.mxu0 %v272
    %286 = vmatpush.bf16.msra.mxu0 %v271
    %287 = vmatpush.bf16.msra.mxu0 %v270
    %288 = vmatpush.bf16.msra.mxu0 %v269
    %289 = vmatpush.bf16.msra.mxu0 %v268
    %290 = vmatpush.bf16.msra.mxu0 %v267
    %291 = vmatmul.bf16.gmra.mxu0 %v214
    %v292 = vpop.f32.mrf.mxu0
    %v293 = vadd.f32 %v233, %v292
    %v294 = vpop.f32.mrf.mxu0
    %295 = vdwg.mxu0
    %296 = vst [vmem:[#allocation10] sm:$0xff] %v293
    // Predicated region
    $region46: #{mlp_forward.1} parent=1 // pred_check
      _
    $region47: #{mlp_forward.1} parent=1 // pred_check_branch
      %298 = sbr.rel (0) target = $region49
    $region48: #{mlp_forward.1} parent=1 // pred_region
      %300 = vsyncadd [#allocation4], 0
      %s302 = sshll.u32 [#allocation10], 4
      %s303 = int_to_ptr.vmem [resolvable:$true] %s302
      %s304 = sshll.u32 %s7, 4
      %s305 = int_to_ptr.hbm [resolvable:$true] %s304
      %307 = dma.vmem_to_hbm [thread:$0]  %s303, 128, %s305, [#allocation4]
    $region49: #{mlp_forward.1} parent=1 // pred_fallthru
      _
    // Predicated region
    $region50: #{mlp_forward.1} parent=1 // pred_check
      _
    $region51: #{mlp_forward.1} parent=1 // pred_check_branch
      %309 = sbr.rel (0) target = $region53
    $region52: #{mlp_forward.1} parent=1 // pred_region
      %311 = dma.done [#allocation4], 128
    $region53: #{mlp_forward.1} parent=1 // pred_fallthru
      _
    %312 = vsyncpa [#allocation3], 1
    %313 = vsyncpa [#allocation6], 1
    %314 = vsyncpa [#allocation9], 1
    %315 = vsyncpa [#allocation4], 1

</llo_original>
